<compile_context>
chip_gen: v6e
topology: v6e:2x2x1
jax: 0.10.0
libtpu: 0.0.40
codegen_flags: <defaults>
</compile_context>

<pallas_src>
import functools

import jax
import jax.numpy as jnp
from jax.experimental import pallas as pl
from jax.experimental.pallas import tpu as pltpu


def _round_up(x, m):
    return ((x + m - 1) // m) * m


# ---------------------------------------------------------------------------
# Kernels: out_tile = relu( sum_p W_p @ XT_p ), f32 accumulation, cast on store
# ---------------------------------------------------------------------------
def _relu_matmul_kernel_1(w0_ref, x0_ref, o_ref):
    acc = jnp.dot(w0_ref[...], x0_ref[...], preferred_element_type=jnp.float32)
    o_ref[...] = jnp.maximum(acc, 0.0).astype(o_ref.dtype)


def _relu_matmul_kernel_2(w0_ref, w1_ref, x0_ref, x1_ref, o_ref):
    acc = jnp.dot(w0_ref[...], x0_ref[...], preferred_element_type=jnp.float32)
    acc = acc + jnp.dot(w1_ref[...], x1_ref[...], preferred_element_type=jnp.float32)
    o_ref[...] = jnp.maximum(acc, 0.0).astype(o_ref.dtype)


# ---------------------------------------------------------------------------
# Wrapper: node-axis-only tiling, resident weights, lane-dense output
# ---------------------------------------------------------------------------
def encoder_head_forward(weight_parts, xT_parts, *, block_n=None,
                         out_dtype=jnp.bfloat16):
    """relu(sum_p W_p @ XT_p), tiled over the node (lane) axis.

    weight_parts[p]: [E, D_p]  (cast to bf16 for the MXU)
    xT_parts[p]:     [D_p, N]  contraction-major (canonical MXU RHS)
    returns:         [E, N]    out_dtype
    """
    assert len(weight_parts) == len(xT_parts) and len(weight_parts) in (1, 2)
    E = weight_parts[0].shape[0]
    N = xT_parts[0].shape[1]
    for w, xT in zip(weight_parts, xT_parts):
        assert w.shape[0] == E and w.shape[1] == xT.shape[0] and xT.shape[1] == N

    w_parts = [w.astype(jnp.bfloat16) for w in weight_parts]
    x_parts = [x.astype(jnp.bfloat16) for x in xT_parts]
    d_parts = [w.shape[1] for w in w_parts]

    # Node tile: multiple of 128 (unmasked lane-dense stores except the ragged
    # last tile); keep the f32 accumulator tile E*block_n <= ~64K elements.
    if block_n is None:
        block_n = 512 if E * 512 <= 64 * 1024 else 256
    block_n = max(128, _round_up(block_n, 128))
    block_n = min(block_n, _round_up(N, 128))   # don't over-tile small batches

    out_itemsize = jnp.dtype(out_dtype).itemsize

    def footprint(bn):
        # Double-buffered output + X^T tiles; weights counted 2x conservatively.
        # TODO(synk): single-buffer the resident weights (pipeline_mode=
        # pl.Buffered(1)) once validated, and drop the 2x weight term.
        f = 2 * E * bn * out_itemsize
        for d in d_parts:
            f += 2 * d * bn * 2        # bf16 X^T tile, double-buffered
            f += 2 * E * d * 2         # bf16 resident weight (constant index_map)
        return f

    # Generation-aware VMEM budget: exact footprint + headroom, capped below
    # the chip's VMEM capacity (v7x: 64 MiB -> ~48 MiB cap; v5e/v6e: ~96 MiB).
    try:
        cap = int(0.75 * pltpu.get_tpu_info().vmem_capacity_bytes)
    except Exception:
        cap = 48 << 20                 # safe default across v5e/v6e/v7x
    cap = max(cap, 16 << 20)
    while footprint(block_n) * 5 // 4 > cap and block_n > 128:
        block_n -= 128
    vmem_limit = int(min(max(footprint(block_n) * 5 // 4 + (2 << 20), 8 << 20), cap))

    grid = (pl.cdiv(N, block_n),)      # ragged last node tile handled by Pallas

    kernel = _relu_matmul_kernel_1 if len(w_parts) == 1 else _relu_matmul_kernel_2

    in_specs = (
        # Resident weights: blocks span the full [E, D_p] arrays (always legal,
        # no explicit zero-padding needed), constant index_map.
        [pl.BlockSpec((E, d), lambda i: (0, 0)) for d in d_parts]
        # Contraction-major node tiles of X^T: [D_p (full), block_n].
        + [pl.BlockSpec((d, block_n), lambda i: (0, i)) for d in d_parts]
    )

    out = pl.pallas_call(
        kernel,
        out_shape=jax.ShapeDtypeStruct((E, N), out_dtype),
        grid_spec=pltpu.PrefetchScalarGridSpec(
            num_scalar_prefetch=0,
            grid=grid,
            in_specs=in_specs,
            out_specs=pl.BlockSpec((E, block_n), lambda i: (0, i)),
        ),
        compiler_params=pltpu.CompilerParams(
            dimension_semantics=("parallel",),
            vmem_limit_bytes=vmem_limit,
        ),
    )(*w_parts, *x_parts)
    return out


# ---------------------------------------------------------------------------
# Aggregator glue (injected dependency of Encoder): masked mean of sampled
# neighbor rows, emitted contraction-major [D, N] bf16 so the kernel consumes
# a canonical MXU RHS (cast + transpose fuse with the gather/mean under jit).
# ---------------------------------------------------------------------------
def mean_aggregator_T(features_table, all_neighbors, neighbor_mask=None):
    gathered = features_table[all_neighbors]                 # [N, S, D] (XLA gather)
    if neighbor_mask is None:
        neigh = jnp.mean(gathered, axis=1)
    else:
        m = neighbor_mask.astype(gathered.dtype)[..., None]  # [N, S, 1]
        cnt = jnp.maximum(jnp.sum(m, axis=1), 1.0)           # [N, 1]
        neigh = jnp.sum(gathered * m, axis=1) / cnt
    return neigh.astype(jnp.bfloat16).T                      # [D, N]


def encoder_apply(weight, features_table, nodes, all_neighbors,
                  neighbor_mask=None, *, gcn=False, block_n=None,
                  out_dtype=jnp.bfloat16):
    """Encoder.forward: aggregate -> (gcn: split self/neigh contraction) -> relu(W @ C^T)."""
    neigh_T = mean_aggregator_T(features_table, all_neighbors, neighbor_mask)  # [D, N]
    D = features_table.shape[1]
    if gcn:
        # combined = [self || neigh]; avoid materializing the concat by splitting
        # the contraction: W[:, :D] @ self^T + W[:, D:] @ neigh^T.
        self_T = features_table[nodes].astype(jnp.bfloat16).T                  # [D, N]
        w_parts = [weight[:, :D], weight[:, D:]]
        x_parts = [self_T, neigh_T]
    else:
        w_parts = [weight]
        x_parts = [neigh_T]
    return encoder_head_forward(w_parts, x_parts, block_n=block_n,
                                out_dtype=out_dtype)                            # [E, N]


def _xavier_uniform(key, shape):
    fan_out, fan_in = shape
    bound = (6.0 / (fan_in + fan_out)) ** 0.5
    return jax.random.uniform(key, shape, jnp.float32, -bound, bound)


if __name__ == "__main__":
    key = jax.random.PRNGKey(0)
    k_feat, k_w1, k_w2, k_nbr, k_msk, k_nodes = jax.random.split(key, 6)

    num_total_nodes = 512
    feat_dim = 128
    embed_dim = 128
    num_sample = 8
    batch_nodes = 300        # not a multiple of 128 -> exercises the ragged last tile

    features_table = jax.random.normal(
        k_feat, (num_total_nodes, feat_dim), jnp.float32)

    weight = _xavier_uniform(k_w1, (embed_dim, feat_dim))             # gcn=False
    weight_gcn = _xavier_uniform(k_w2, (embed_dim, 2 * feat_dim))     # gcn=True

    nodes = jax.random.randint(
        k_nodes, (batch_nodes,), 0, num_total_nodes, dtype=jnp.int32)
    all_neighbors = jax.random.randint(
        k_nbr, (batch_nodes, num_sample), 0, num_total_nodes, dtype=jnp.int32)
    neighbor_mask = jax.random.bernoulli(k_msk, 0.8, (batch_nodes, num_sample))
    neighbor_mask = neighbor_mask.at[:, 0].set(True)   # >= 1 valid neighbor per node

    fwd = jax.jit(functools.partial(encoder_apply, gcn=False))
    fwd_gcn = jax.jit(functools.partial(encoder_apply, gcn=True))

    # Shared f32 reference aggregation (then bf16-cast, mirroring kernel inputs).
    m = neighbor_mask.astype(jnp.float32)[..., None]
    cnt = jnp.maximum(jnp.sum(m, axis=1), 1.0)
    neigh_f32 = jnp.sum(features_table[all_neighbors] * m, axis=1) / cnt   # [N, D]
    xb = neigh_f32.astype(jnp.bfloat16).astype(jnp.float32)

    # ---- gcn=False path: combined = neigh_feats ------------------------------
    out = jax.block_until_ready(
        fwd(weight, features_table, nodes, all_neighbors, neighbor_mask))
    wb = weight.astype(jnp.bfloat16).astype(jnp.float32)
    ref = jnp.maximum(wb @ xb.T, 0.0)
    assert out.shape == (embed_dim, batch_nodes)
    assert out.dtype == jnp.bfloat16
    err = float(jnp.max(jnp.abs(out.astype(jnp.float32) - ref)))
    assert jnp.allclose(out.astype(jnp.float32), ref, atol=2e-2, rtol=2e-2), err

    # ---- gcn=True path: combined = concat([self, neigh]) ---------------------
    out_g = jax.block_until_ready(
        fwd_gcn(weight_gcn, features_table, nodes, all_neighbors, neighbor_mask))
    selfb = features_table[nodes].astype(jnp.bfloat16).astype(jnp.float32)
    wg = weight_gcn.astype(jnp.bfloat16).astype(jnp.float32)
    ref_g = jnp.maximum(wg[:, :feat_dim] @ selfb.T + wg[:, feat_dim:] @ xb.T, 0.0)
    assert out_g.shape == (embed_dim, batch_nodes)
    assert out_g.dtype == jnp.bfloat16
    err_g = float(jnp.max(jnp.abs(out_g.astype(jnp.float32) - ref_g)))
    assert jnp.allclose(out_g.astype(jnp.float32), ref_g, atol=2e-2, rtol=2e-2), err_g

    print("KERNEL_OK")
</pallas_src>

<mosaic_0001>
module attributes {stable_mosaic.version = 11 : i64} {
  func.func @_relu_matmul_kernel_1(%arg0: i32, %arg1: memref<128x128xbf16, #tpu.memory_space<vmem>>, %arg2: memref<128x384xbf16, #tpu.memory_space<vmem>>, %arg3: memref<128x384xbf16, #tpu.memory_space<vmem>>) attributes {dimension_semantics = [#tpu.dimension_semantics<parallel>], iteration_bounds = array<i64: 1>, scalar_prefetch = 0 : i64, scratch_operands = 0 : i64, tpu.core_type = #tpu.core_type<tc>, window_params = [{pipeline_mode = #tpu.pipeline_mode<synchronous>, transform_indices = @transform_0, window_bounds = array<i64: 128, 128>}, {transform_indices = @transform_1, window_bounds = array<i64: 128, 384>}, {transform_indices = @transform_2, window_bounds = array<i64: 128, 384>}]} {
    %c0 = arith.constant 0 : index
    %c0_0 = arith.constant 0 : index
    %0 = vector.load %arg1[%c0, %c0_0] : memref<128x128xbf16, #tpu.memory_space<vmem>>, vector<128x128xbf16>
    %c0_1 = arith.constant 0 : index
    %c0_2 = arith.constant 0 : index
    %1 = vector.load %arg2[%c0_1, %c0_2] : memref<128x384xbf16, #tpu.memory_space<vmem>>, vector<128x384xbf16>
    %cst = arith.constant dense<0.000000e+00> : vector<128x384xf32>
    %2 = tpu.matmul %0, %1, %cst {dimension_numbers = #tpu.dot_dimension_numbers<[1], [0], [0], [1], [0, 0, 1, 1], [], []>} : vector<128x128xbf16>, vector<128x384xbf16>, vector<128x384xf32> -> vector<128x384xf32>
    %cst_3 = arith.constant 0.000000e+00 : f32
    %3 = vector.broadcast %cst_3 : f32 to vector<128x384xf32>
    %4 = arith.maximumf %2, %3 : vector<128x384xf32>
    %5 = arith.truncf %4 : vector<128x384xf32> to vector<128x384xbf16>
    %c0_4 = arith.constant 0 : index
    %c0_5 = arith.constant 0 : index
    %6 = vector.load %arg3[%c0_4, %c0_5] : memref<128x384xbf16, #tpu.memory_space<vmem>>, vector<128x384xbf16>
    tpu.vector_store %arg3[%c0_4, %c0_5], %5 {strides = array<i32>} : memref<128x384xbf16, #tpu.memory_space<vmem>>, vector<128x384xbf16>,
    return
  }
  func.func @transform_0(%arg0: i32) -> (i32, i32) {
    %c0_i32 = arith.constant 0 : i32
    %c0_i32_0 = arith.constant 0 : i32
    %c0_i32_1 = arith.constant 0 : i32
    return %c0_i32, %c0_i32_0 : i32, i32
  }
  func.func @transform_1(%arg0: i32) -> (i32, i32) {
    %c0_i32 = arith.constant 0 : i32
    %c0_i32_0 = arith.constant 0 : i32
    return %c0_i32, %arg0 : i32, i32
  }
  func.func @transform_2(%arg0: i32) -> (i32, i32) {
    %c0_i32 = arith.constant 0 : i32
    %c0_i32_0 = arith.constant 0 : i32
    return %c0_i32, %arg0 : i32, i32
  }
}

</mosaic_0001>

<llo_original>
// kernel: encoder_apply.1
$region0: #{encoder_apply.1}
  #allocation0 [shape = 'u32[]', space=smem, size = 0x4, offset = 0x4, fixed_abs, tag = 'smem constant byte address 0x4 - core index']
  #allocation1 [shape = 'u32[144,128]{1,0:T(1,128)}', space=vmem, size = 0x12000, scoped, tag = 'internal scratch']
  %s0 = inlined_call_operand.vmem [shape: bf16[128,128], index: 0, kind: input, shape index: {}]
  %s1 = inlined_call_operand.vmem [shape: bf16[128,300], index: 1, kind: input, shape index: {}]
  %s2 = inlined_call_operand.vmem [shape: bf16[128,300], index: 2, kind: output, shape index: {}]
  %s3 = sld [smem:[#allocation0]]
  $region18: #{encoder_apply.1} parent=0
    _
  %s5 = ssub.s32 1, %s3
  %s6 = scalar_select 0, %s5, %s3
  // Predicated region
  $region2: #{encoder_apply.1} parent=0 // pred_check
    _
  $region3: #{encoder_apply.1} parent=0 // pred_check_branch
    %8 = sbr.rel (0) target = $region5
  $region4: #{encoder_apply.1} parent=0 // pred_region
    _
  $region5: #{encoder_apply.1} parent=0 // pred_fallthru
    _
  // Predicated region
  $region6: #{encoder_apply.1} parent=0 // pred_check
    _
  $region7: #{encoder_apply.1} parent=0 // pred_check_branch
    %10 = sbr.rel (0) target = $region9
  $region8: #{encoder_apply.1} parent=0 // pred_region
    _
  $region9: #{encoder_apply.1} parent=0 // pred_fallthru
    _
  %v12 = vld [vmem:[%s0] sm:$0xf]
  %v13 = vld [vmem:[%s0 + $0x4] sm:$0xf]
  %v14 = vld [vmem:[%s0 + $0x8] sm:$0xf]
  %v15 = vld [vmem:[%s0 + $0xc] sm:$0xf]
  %v16 = vld [vmem:[%s0 + $0x10] sm:$0xf]
  %v17 = vld [vmem:[%s0 + $0x14] sm:$0xf]
  %v18 = vld [vmem:[%s0 + $0x18] sm:$0xf]
  %v19 = vld [vmem:[%s0 + $0x1c] sm:$0xf]
  %v20 = vld [vmem:[%s0 + $0x20] sm:$0xf]
  %v21 = vld [vmem:[%s0 + $0x24] sm:$0xf]
  %v22 = vld [vmem:[%s0 + $0x28] sm:$0xf]
  %v23 = vld [vmem:[%s0 + $0x2c] sm:$0xf]
  %v24 = vld [vmem:[%s0 + $0x30] sm:$0xf]
  %v25 = vld [vmem:[%s0 + $0x34] sm:$0xf]
  %v26 = vld [vmem:[%s0 + $0x38] sm:$0xf]
  %v27 = vld [vmem:[%s0 + $0x3c] sm:$0xf]
  %v28 = vld [vmem:[%s1] sm:$0xff]
  %v29 = vld [vmem:[%s1 + $0x8] sm:$0xf]
  %v30 = vld [vmem:[%s1 + $0xc] sm:$0xff]
  %v31 = vld [vmem:[%s1 + $0x14] sm:$0xf]
  %v32 = vld [vmem:[%s1 + $0x18] sm:$0xff]
  %v33 = vld [vmem:[%s1 + $0x20] sm:$0xf]
  %v34 = vld [vmem:[%s1 + $0x24] sm:$0xff]
  %v35 = vld [vmem:[%s1 + $0x2c] sm:$0xf]
  %v36 = vld [vmem:[%s1 + $0x30] sm:$0xff]
  %v37 = vld [vmem:[%s1 + $0x38] sm:$0xf]
  %v38 = vld [vmem:[%s1 + $0x3c] sm:$0xff]
  %v39 = vld [vmem:[%s1 + $0x44] sm:$0xf]
  %v40 = vld [vmem:[%s1 + $0x48] sm:$0xff]
  %v41 = vld [vmem:[%s1 + $0x50] sm:$0xf]
  %v42 = vld [vmem:[%s1 + $0x54] sm:$0xff]
  %v43 = vld [vmem:[%s1 + $0x5c] sm:$0xf]
  %v44 = vld [vmem:[%s1 + $0x60] sm:$0xff]
  %v45 = vld [vmem:[%s1 + $0x68] sm:$0xf]
  %v46 = vld [vmem:[%s1 + $0x6c] sm:$0xff]
  %v47 = vld [vmem:[%s1 + $0x74] sm:$0xf]
  %v48 = vld [vmem:[%s1 + $0x78] sm:$0xff]
  %v49 = vld [vmem:[%s1 + $0x80] sm:$0xf]
  %v50 = vld [vmem:[%s1 + $0x84] sm:$0xff]
  %v51 = vld [vmem:[%s1 + $0x8c] sm:$0xf]
  %v52 = vld [vmem:[%s1 + $0x90] sm:$0xff]
  %v53 = vld [vmem:[%s1 + $0x98] sm:$0xf]
  %v54 = vld [vmem:[%s1 + $0x9c] sm:$0xff]
  %v55 = vld [vmem:[%s1 + $0xa4] sm:$0xf]
  %v56 = vld [vmem:[%s1 + $0xa8] sm:$0xff]
  %v57 = vld [vmem:[%s1 + $0xb0] sm:$0xf]
  %v58 = vld [vmem:[%s1 + $0xb4] sm:$0xff]
  %v59 = vld [vmem:[%s1 + $0xbc] sm:$0xf]
  %v76 = vunpack.c.l.b16 %v12
  %v77 = vunpack.c.l.b16 %v13
  %v78 = vunpack.c.l.b16 %v14
  %v79 = vunpack.c.l.b16 %v15
  %v80 = vunpack.c.l.b16 %v16
  %v81 = vunpack.c.l.b16 %v17
  %v82 = vunpack.c.l.b16 %v18
  %v83 = vunpack.c.l.b16 %v19
  %v84 = vunpack.c.l.b16 %v20
  %v85 = vunpack.c.l.b16 %v21
  %v86 = vunpack.c.l.b16 %v22
  %v87 = vunpack.c.l.b16 %v23
  %v88 = vunpack.c.l.b16 %v24
  %v89 = vunpack.c.l.b16 %v25
  %v90 = vunpack.c.l.b16 %v26
  %v91 = vunpack.c.l.b16 %v27
  %v92 = vpack.c.b16 %v77, %v76
  %v93 = vpack.c.b16 %v79, %v78
  %v94 = vpack.c.b16 %v81, %v80
  %v95 = vpack.c.b16 %v83, %v82
  %v96 = vpack.c.b16 %v85, %v84
  %v97 = vpack.c.b16 %v87, %v86
  %v98 = vpack.c.b16 %v89, %v88
  %v99 = vpack.c.b16 %v91, %v90
  %v140 = vunpack.c.l.b16 %v28
  %v141 = vunpack.c.h.b16 %v28
  %v142 = vunpack.c.l.b16 %v29
  %v143 = vunpack.c.l.b16 %v30
  %v144 = vunpack.c.h.b16 %v30
  %v145 = vunpack.c.l.b16 %v31
  %v146 = vunpack.c.l.b16 %v32
  %v147 = vunpack.c.h.b16 %v32
  %v148 = vunpack.c.l.b16 %v33
  %v149 = vunpack.c.l.b16 %v34
  %v150 = vunpack.c.h.b16 %v34
  %v151 = vunpack.c.l.b16 %v35
  %v152 = vunpack.c.l.b16 %v36
  %v153 = vunpack.c.h.b16 %v36
  %v154 = vunpack.c.l.b16 %v37
  %v155 = vunpack.c.l.b16 %v38
  %v156 = vunpack.c.h.b16 %v38
  %v157 = vunpack.c.l.b16 %v39
  %v158 = vunpack.c.l.b16 %v40
  %v159 = vunpack.c.h.b16 %v40
  %v160 = vunpack.c.l.b16 %v41
  %v161 = vunpack.c.l.b16 %v42
  %v162 = vunpack.c.h.b16 %v42
  %v163 = vunpack.c.l.b16 %v43
  %v164 = vunpack.c.l.b16 %v44
  %v165 = vunpack.c.h.b16 %v44
  %v166 = vunpack.c.l.b16 %v45
  %v167 = vunpack.c.l.b16 %v46
  %v168 = vunpack.c.h.b16 %v46
  %v169 = vunpack.c.l.b16 %v47
  %v170 = vunpack.c.l.b16 %v48
  %v171 = vunpack.c.h.b16 %v48
  %v172 = vunpack.c.l.b16 %v49
  %v173 = vunpack.c.l.b16 %v50
  %v174 = vunpack.c.h.b16 %v50
  %v175 = vunpack.c.l.b16 %v51
  %v176 = vunpack.c.l.b16 %v52
  %v177 = vunpack.c.h.b16 %v52
  %v178 = vunpack.c.l.b16 %v53
  %v179 = vunpack.c.l.b16 %v54
  %v180 = vunpack.c.h.b16 %v54
  %v181 = vunpack.c.l.b16 %v55
  %v182 = vunpack.c.l.b16 %v56
  %v183 = vunpack.c.h.b16 %v56
  %v184 = vunpack.c.l.b16 %v57
  %v185 = vunpack.c.l.b16 %v58
  %v186 = vunpack.c.h.b16 %v58
  %v187 = vunpack.c.l.b16 %v59
  %v188 = vpack.c.b16 %v143, %v140
  %v189 = vpack.c.b16 %v144, %v141
  %v190 = vpack.c.b16 %v145, %v142
  %v191 = vpack.c.b16 %v149, %v146
  %v192 = vpack.c.b16 %v150, %v147
  %v193 = vpack.c.b16 %v151, %v148
  %v194 = vpack.c.b16 %v155, %v152
  %v195 = vpack.c.b16 %v156, %v153
  %v196 = vpack.c.b16 %v157, %v154
  %v197 = vpack.c.b16 %v161, %v158
  %v198 = vpack.c.b16 %v162, %v159
  %v199 = vpack.c.b16 %v163, %v160
  %v200 = vpack.c.b16 %v167, %v164
  %v201 = vpack.c.b16 %v168, %v165
  %v202 = vpack.c.b16 %v169, %v166
  %v203 = vpack.c.b16 %v173, %v170
  %v204 = vpack.c.b16 %v174, %v171
  %v205 = vpack.c.b16 %v175, %v172
  %v206 = vpack.c.b16 %v179, %v176
  %v207 = vpack.c.b16 %v180, %v177
  %v208 = vpack.c.b16 %v181, %v178
  %v209 = vpack.c.b16 %v185, %v182
  %v210 = vpack.c.b16 %v186, %v183
  %v211 = vpack.c.b16 %v187, %v184
  %236 = vmatprep.subr.bf16.mxu0 %v210
  %237 = vmatpush1.bf16.msra.mxu0 %v209
  %238 = vmatprep.subr.bf16.mxu0 %v207
  %239 = vmatpush1.bf16.msra.mxu0 %v206
  %240 = vmatprep.subr.bf16.mxu0 %v204
  %241 = vmatpush1.bf16.msra.mxu0 %v203
  %242 = vmatprep.subr.bf16.mxu0 %v201
  %243 = vmatpush1.bf16.msra.mxu0 %v200
  %244 = vmatprep.subr.bf16.mxu0 %v198
  %245 = vmatpush1.bf16.msra.mxu0 %v197
  %246 = vmatprep.subr.bf16.mxu0 %v195
  %247 = vmatpush1.bf16.msra.mxu0 %v194
  %248 = vmatprep.subr.bf16.mxu0 %v192
  %249 = vmatpush1.bf16.msra.mxu0 %v191
  %250 = vmatprep.subr.bf16.mxu0 %v189
  %251 = vmatpush1.bf16.msra.mxu0 %v188
  %252 = vmatprep.subr.bf16.mxu0 0
  %253 = vmatpush2.bf16.msra.mxu0 0
  %254 = vmatprep.subr.bf16.mxu0 0
  %255 = vmatpush2.bf16.msra.mxu0 0
  %256 = vmatprep.subr.bf16.mxu0 0
  %257 = vmatpush2.bf16.msra.mxu0 0
  %258 = vmatprep.subr.bf16.mxu0 0
  %259 = vmatpush2.bf16.msra.mxu0 0
  %260 = vmatprep.subr.bf16.mxu0 0
  %261 = vmatpush2.bf16.msra.mxu0 0
  %262 = vmatprep.subr.bf16.mxu0 0
  %263 = vmatpush2.bf16.msra.mxu0 0
  %264 = vmatprep.subr.bf16.mxu0 0
  %265 = vmatpush2.bf16.msra.mxu0 0
  %266 = vmatprep.subr.bf16.mxu0 0
  %267 = vmatpush2.bf16.msra.mxu0 0
  %268 = vmatprep.mubr.bf16.mxu0 0
  %269 = vmatmul.mubr.bf16.gmra.mxu0 %v92
  %v270 = vpop.f32.mrf.mxu0
  %v271 = vadd.f32 0.0, %v270
  %v272 = vpop.f32.mrf.mxu0
  %v273 = vadd.f32 0.0, %v272
  %v274 = vpop.f32.mrf.mxu0
  %v275 = vadd.f32 0.0, %v274
  %v276 = vpop.f32.mrf.mxu0
  %v277 = vadd.f32 0.0, %v276
  %278 = vmatprep.mubr.bf16.mxu0 0
  %279 = vmatmul.mubr.bf16.gmra.mxu0 %v93
  %v280 = vpop.f32.mrf.mxu0
  %v281 = vadd.f32 0.0, %v280
  %v282 = vpop.f32.mrf.mxu0
  %v283 = vadd.f32 0.0, %v282
  %v284 = vpop.f32.mrf.mxu0
  %v285 = vadd.f32 0.0, %v284
  %v286 = vpop.f32.mrf.mxu0
  %v287 = vadd.f32 0.0, %v286
  %288 = vmatprep.mubr.bf16.mxu0 0
  %289 = vmatmul.mubr.bf16.gmra.mxu0 %v94
  %v290 = vpop.f32.mrf.mxu0
  %v291 = vadd.f32 0.0, %v290
  %v292 = vpop.f32.mrf.mxu0
  %v293 = vadd.f32 0.0, %v292
  %v294 = vpop.f32.mrf.mxu0
  %v295 = vadd.f32 0.0, %v294
  %v296 = vpop.f32.mrf.mxu0
  %v297 = vadd.f32 0.0, %v296
  %298 = vmatprep.mubr.bf16.mxu0 0
  %299 = vmatmul.mubr.bf16.gmra.mxu0 %v95
  %v300 = vpop.f32.mrf.mxu0
  %v301 = vadd.f32 0.0, %v300
  %v302 = vpop.f32.mrf.mxu0
  %v303 = vadd.f32 0.0, %v302
  %v304 = vpop.f32.mrf.mxu0
  %v305 = vadd.f32 0.0, %v304
  %v306 = vpop.f32.mrf.mxu0
  %v307 = vadd.f32 0.0, %v306
  %308 = vmatprep.mubr.bf16.mxu0 0
  %309 = vmatmul.mubr.bf16.gmra.mxu0 %v96
  %v310 = vpop.f32.mrf.mxu0
  %v311 = vadd.f32 0.0, %v310
  %v312 = vpop.f32.mrf.mxu0
  %v313 = vadd.f32 0.0, %v312
  %v314 = vpop.f32.mrf.mxu0
  %v315 = vadd.f32 0.0, %v314
  %v316 = vpop.f32.mrf.mxu0
  %v317 = vadd.f32 0.0, %v316
  %318 = vmatprep.mubr.bf16.mxu0 0
  %319 = vmatmul.mubr.bf16.gmra.mxu0 %v97
  %v320 = vpop.f32.mrf.mxu0
  %v321 = vadd.f32 0.0, %v320
  %v322 = vpop.f32.mrf.mxu0
  %v323 = vadd.f32 0.0, %v322
  %v324 = vpop.f32.mrf.mxu0
  %v325 = vadd.f32 0.0, %v324
  %v326 = vpop.f32.mrf.mxu0
  %v327 = vadd.f32 0.0, %v326
  %328 = vmatprep.mubr.bf16.mxu0 0
  %329 = vmatmul.mubr.bf16.gmra.mxu0 %v98
  %v330 = vpop.f32.mrf.mxu0
  %v331 = vadd.f32 0.0, %v330
  %v332 = vpop.f32.mrf.mxu0
  %v333 = vadd.f32 0.0, %v332
  %v334 = vpop.f32.mrf.mxu0
  %v335 = vadd.f32 0.0, %v334
  %v336 = vpop.f32.mrf.mxu0
  %v337 = vadd.f32 0.0, %v336
  %338 = vmatprep.mubr.bf16.mxu0 0
  %339 = vmatmul.mubr.bf16.gmra.mxu0 %v99
  %v340 = vpop.f32.mrf.mxu0
  %v341 = vadd.f32 0.0, %v340
  %v342 = vpop.f32.mrf.mxu0
  %v343 = vadd.f32 0.0, %v342
  %v344 = vpop.f32.mrf.mxu0
  %v345 = vadd.f32 0.0, %v344
  %v346 = vpop.f32.mrf.mxu0
  %v347 = vadd.f32 0.0, %v346
  %348 = vdwg.mxu0
  %349 = vmatprep.subr.bf16.mxu0 0
  %350 = vmatpush1.bf16.msra.mxu0 %v211
  %351 = vmatprep.subr.bf16.mxu0 0
  %352 = vmatpush1.bf16.msra.mxu0 %v208
  %353 = vmatprep.subr.bf16.mxu0 0
  %354 = vmatpush1.bf16.msra.mxu0 %v205
  %355 = vmatprep.subr.bf16.mxu0 0
  %356 = vmatpush1.bf16.msra.mxu0 %v202
  %357 = vmatprep.subr.bf16.mxu0 0
  %358 = vmatpush1.bf16.msra.mxu0 %v199
  %359 = vmatprep.subr.bf16.mxu0 0
  %360 = vmatpush1.bf16.msra.mxu0 %v196
  %361 = vmatprep.subr.bf16.mxu0 0
  %362 = vmatpush1.bf16.msra.mxu0 %v193
  %363 = vmatprep.subr.bf16.mxu0 0
  %364 = vmatpush1.bf16.msra.mxu0 %v190
  %365 = vmatprep.subr.bf16.mxu0 0
  %366 = vmatpush2.bf16.msra.mxu0 0
  %367 = vmatprep.subr.bf16.mxu0 0
  %368 = vmatpush2.bf16.msra.mxu0 0
  %369 = vmatprep.subr.bf16.mxu0 0
  %370 = vmatpush2.bf16.msra.mxu0 0
  %371 = vmatprep.subr.bf16.mxu0 0
  %372 = vmatpush2.bf16.msra.mxu0 0
  %373 = vmatprep.subr.bf16.mxu0 0
  %374 = vmatpush2.bf16.msra.mxu0 0
  %375 = vmatprep.subr.bf16.mxu0 0
  %376 = vmatpush2.bf16.msra.mxu0 0
  %377 = vmatprep.subr.bf16.mxu0 0
  %378 = vmatpush2.bf16.msra.mxu0 0
  %379 = vmatprep.subr.bf16.mxu0 0
  %380 = vmatpush2.bf16.msra.mxu0 0
  %381 = vmatprep.mubr.bf16.mxu0 0
  %382 = vmatmul.mubr.bf16.gmra.mxu0 %v92
  %v383 = vpop.f32.mrf.mxu0
  %v384 = vadd.f32 0.0, %v383
  %v385 = vpop.f32.mrf.mxu0
  %v386 = vpop.f32.mrf.mxu0
  %v387 = vadd.f32 0.0, %v386
  %v388 = vpop.f32.mrf.mxu0
  %389 = vmatprep.mubr.bf16.mxu0 0
  %390 = vmatmul.mubr.bf16.gmra.mxu0 %v93
  %v391 = vpop.f32.mrf.mxu0
  %v392 = vadd.f32 0.0, %v391
  %v393 = vpop.f32.mrf.mxu0
  %v394 = vpop.f32.mrf.mxu0
  %v395 = vadd.f32 0.0, %v394
  %v396 = vpop.f32.mrf.mxu0
  %397 = vmatprep.mubr.bf16.mxu0 0
  %398 = vmatmul.mubr.bf16.gmra.mxu0 %v94
  %v399 = vpop.f32.mrf.mxu0
  %v400 = vadd.f32 0.0, %v399
  %v401 = vpop.f32.mrf.mxu0
  %v402 = vpop.f32.mrf.mxu0
  %v403 = vadd.f32 0.0, %v402
  %v404 = vpop.f32.mrf.mxu0
  %405 = vmatprep.mubr.bf16.mxu0 0
  %406 = vmatmul.mubr.bf16.gmra.mxu0 %v95
  %v407 = vpop.f32.mrf.mxu0
  %v408 = vadd.f32 0.0, %v407
  %v409 = vpop.f32.mrf.mxu0
  %v410 = vpop.f32.mrf.mxu0
  %v411 = vadd.f32 0.0, %v410
  %v412 = vpop.f32.mrf.mxu0
  %413 = vmatprep.mubr.bf16.mxu0 0
  %414 = vmatmul.mubr.bf16.gmra.mxu0 %v96
  %v415 = vpop.f32.mrf.mxu0
  %v416 = vadd.f32 0.0, %v415
  %v417 = vpop.f32.mrf.mxu0
  %v418 = vpop.f32.mrf.mxu0
  %v419 = vadd.f32 0.0, %v418
  %v420 = vpop.f32.mrf.mxu0
  %421 = vmatprep.mubr.bf16.mxu0 0
  %422 = vmatmul.mubr.bf16.gmra.mxu0 %v97
  %v423 = vpop.f32.mrf.mxu0
  %v424 = vadd.f32 0.0, %v423
  %v425 = vpop.f32.mrf.mxu0
  %v426 = vpop.f32.mrf.mxu0
  %v427 = vadd.f32 0.0, %v426
  %v428 = vpop.f32.mrf.mxu0
  %429 = vmatprep.mubr.bf16.mxu0 0
  %430 = vmatmul.mubr.bf16.gmra.mxu0 %v98
  %v431 = vpop.f32.mrf.mxu0
  %v432 = vadd.f32 0.0, %v431
  %v433 = vpop.f32.mrf.mxu0
  %v434 = vpop.f32.mrf.mxu0
  %v435 = vadd.f32 0.0, %v434
  %v436 = vpop.f32.mrf.mxu0
  %437 = vmatprep.mubr.bf16.mxu0 0
  %438 = vmatmul.mubr.bf16.gmra.mxu0 %v99
  %v439 = vpop.f32.mrf.mxu0
  %v440 = vadd.f32 0.0, %v439
  %v441 = vpop.f32.mrf.mxu0
  %v442 = vpop.f32.mrf.mxu0
  %v443 = vadd.f32 0.0, %v442
  %v444 = vpop.f32.mrf.mxu0
  %445 = vdwg.mxu0
  %v446 = vmax.f32 %v271, 0.0
  %v447 = vmax.f32 %v273, 0.0
  %v448 = vmax.f32 %v384, 0.0
  %v449 = vmax.f32 %v275, 0.0
  %v450 = vmax.f32 %v277, 0.0
  %v451 = vmax.f32 %v387, 0.0
  %v452 = vmax.f32 %v281, 0.0
  %v453 = vmax.f32 %v283, 0.0
  %v454 = vmax.f32 %v392, 0.0
  %v455 = vmax.f32 %v285, 0.0
  %v456 = vmax.f32 %v287, 0.0
  %v457 = vmax.f32 %v395, 0.0
  %v458 = vmax.f32 %v291, 0.0
  %v459 = vmax.f32 %v293, 0.0
  %v460 = vmax.f32 %v400, 0.0
  %v461 = vmax.f32 %v295, 0.0
  %v462 = vmax.f32 %v297, 0.0
  %v463 = vmax.f32 %v403, 0.0
  %v464 = vmax.f32 %v301, 0.0
  %v465 = vmax.f32 %v303, 0.0
  %v466 = vmax.f32 %v408, 0.0
  %v467 = vmax.f32 %v305, 0.0
  %v468 = vmax.f32 %v307, 0.0
  %v469 = vmax.f32 %v411, 0.0
  %v470 = vmax.f32 %v311, 0.0
  %v471 = vmax.f32 %v313, 0.0
  %v472 = vmax.f32 %v416, 0.0
  %v473 = vmax.f32 %v315, 0.0
  %v474 = vmax.f32 %v317, 0.0
  %v475 = vmax.f32 %v419, 0.0
  %v476 = vmax.f32 %v321, 0.0
  %v477 = vmax.f32 %v323, 0.0
  %v478 = vmax.f32 %v424, 0.0
  %v479 = vmax.f32 %v325, 0.0
  %v480 = vmax.f32 %v327, 0.0
  %v481 = vmax.f32 %v427, 0.0
  %v482 = vmax.f32 %v331, 0.0
  %v483 = vmax.f32 %v333, 0.0
  %v484 = vmax.f32 %v432, 0.0
  %v485 = vmax.f32 %v335, 0.0
  %v486 = vmax.f32 %v337, 0.0
  %v487 = vmax.f32 %v435, 0.0
  %v488 = vmax.f32 %v341, 0.0
  %v489 = vmax.f32 %v343, 0.0
  %v490 = vmax.f32 %v440, 0.0
  %v491 = vmax.f32 %v345, 0.0
  %v492 = vmax.f32 %v347, 0.0
  %v493 = vmax.f32 %v443, 0.0
  %v494 = vpack.c.bf16 %v449, %v446
  %v495 = vpack.c.bf16 %v450, %v447
  %v496 = vpack.c.bf16 %v451, %v448
  %v497 = vpack.c.bf16 %v455, %v452
  %v498 = vpack.c.bf16 %v456, %v453
  %v499 = vpack.c.bf16 %v457, %v454
  %v500 = vpack.c.bf16 %v461, %v458
  %v501 = vpack.c.bf16 %v462, %v459
  %v502 = vpack.c.bf16 %v463, %v460
  %v503 = vpack.c.bf16 %v467, %v464
  %v504 = vpack.c.bf16 %v468, %v465
  %v505 = vpack.c.bf16 %v469, %v466
  %v506 = vpack.c.bf16 %v473, %v470
  %v507 = vpack.c.bf16 %v474, %v471
  %v508 = vpack.c.bf16 %v475, %v472
  %v509 = vpack.c.bf16 %v479, %v476
  %v510 = vpack.c.bf16 %v480, %v477
  %v511 = vpack.c.bf16 %v481, %v478
  %v512 = vpack.c.bf16 %v485, %v482
  %v513 = vpack.c.bf16 %v486, %v483
  %v514 = vpack.c.bf16 %v487, %v484
  %v515 = vpack.c.bf16 %v491, %v488
  %v516 = vpack.c.bf16 %v492, %v489
  %v517 = vpack.c.bf16 %v493, %v490
  %v542 = vunpack.c.l.b16 %v494
  %v543 = vunpack.c.l.b16 %v495
  %v544 = vunpack.c.l.b16 %v496
  %v545 = vunpack.c.h.b16 %v494
  %v546 = vunpack.c.h.b16 %v495
  %v547 = vunpack.c.h.b16 %v496
  %v548 = vunpack.c.l.b16 %v497
  %v549 = vunpack.c.l.b16 %v498
  %v550 = vunpack.c.l.b16 %v499
  %v551 = vunpack.c.h.b16 %v497
  %v552 = vunpack.c.h.b16 %v498
  %v553 = vunpack.c.h.b16 %v499
  %v554 = vunpack.c.l.b16 %v500
  %v555 = vunpack.c.l.b16 %v501
  %v556 = vunpack.c.l.b16 %v502
  %v557 = vunpack.c.h.b16 %v500
  %v558 = vunpack.c.h.b16 %v501
  %v559 = vunpack.c.h.b16 %v502
  %v560 = vunpack.c.l.b16 %v503
  %v561 = vunpack.c.l.b16 %v504
  %v562 = vunpack.c.l.b16 %v505
  %v563 = vunpack.c.h.b16 %v503
  %v564 = vunpack.c.h.b16 %v504
  %v565 = vunpack.c.h.b16 %v505
  %v566 = vunpack.c.l.b16 %v506
  %v567 = vunpack.c.l.b16 %v507
  %v568 = vunpack.c.l.b16 %v508
  %v569 = vunpack.c.h.b16 %v506
  %v570 = vunpack.c.h.b16 %v507
  %v571 = vunpack.c.h.b16 %v508
  %v572 = vunpack.c.l.b16 %v509
  %v573 = vunpack.c.l.b16 %v510
  %v574 = vunpack.c.l.b16 %v511
  %v575 = vunpack.c.h.b16 %v509
  %v576 = vunpack.c.h.b16 %v510
  %v577 = vunpack.c.h.b16 %v511
  %v578 = vunpack.c.l.b16 %v512
  %v579 = vunpack.c.l.b16 %v513
  %v580 = vunpack.c.l.b16 %v514
  %v581 = vunpack.c.h.b16 %v512
  %v582 = vunpack.c.h.b16 %v513
  %v583 = vunpack.c.h.b16 %v514
  %v584 = vunpack.c.l.b16 %v515
  %v585 = vunpack.c.l.b16 %v516
  %v586 = vunpack.c.l.b16 %v517
  %v587 = vunpack.c.h.b16 %v515
  %v588 = vunpack.c.h.b16 %v516
  %v589 = vunpack.c.h.b16 %v517
  %v590 = vpack.c.b16 %v543, %v542
  %v591 = vpack.c.b16 %v544, %v544
  %v592 = vpack.c.b16 %v546, %v545
  %v593 = vpack.c.b16 %v547, %v547
  %v594 = vpack.c.b16 %v549, %v548
  %v595 = vpack.c.b16 %v550, %v550
  %v596 = vpack.c.b16 %v552, %v551
  %v597 = vpack.c.b16 %v553, %v553
  %v598 = vpack.c.b16 %v555, %v554
  %v599 = vpack.c.b16 %v556, %v556
  %v600 = vpack.c.b16 %v558, %v557
  %v601 = vpack.c.b16 %v559, %v559
  %v602 = vpack.c.b16 %v561, %v560
  %v603 = vpack.c.b16 %v562, %v562
  %v604 = vpack.c.b16 %v564, %v563
  %v605 = vpack.c.b16 %v565, %v565
  %v606 = vpack.c.b16 %v567, %v566
  %v607 = vpack.c.b16 %v568, %v568
  %v608 = vpack.c.b16 %v570, %v569
  %v609 = vpack.c.b16 %v571, %v571
  %v610 = vpack.c.b16 %v573, %v572
  %v611 = vpack.c.b16 %v574, %v574
  %v612 = vpack.c.b16 %v576, %v575
  %v613 = vpack.c.b16 %v577, %v577
  %v614 = vpack.c.b16 %v579, %v578
  %v615 = vpack.c.b16 %v580, %v580
  %v616 = vpack.c.b16 %v582, %v581
  %v617 = vpack.c.b16 %v583, %v583
  %v618 = vpack.c.b16 %v585, %v584
  %v619 = vpack.c.b16 %v586, %v586
  %v620 = vpack.c.b16 %v588, %v587
  %v621 = vpack.c.b16 %v589, %v589
  %654 = vst [vmem:[%s2] sm:$0xff] %v590
  %655 = vst [vmem:[%s2 + $0x8] sm:$0xf] %v591
  %656 = vst [vmem:[%s2 + $0xc] sm:$0xff] %v592
  %657 = vst [vmem:[%s2 + $0x14] sm:$0xf] %v593
  %658 = vst [vmem:[%s2 + $0x18] sm:$0xff] %v594
  %659 = vst [vmem:[%s2 + $0x20] sm:$0xf] %v595
  %660 = vst [vmem:[%s2 + $0x24] sm:$0xff] %v596
  %661 = vst [vmem:[%s2 + $0x2c] sm:$0xf] %v597
  %662 = vst [vmem:[%s2 + $0x30] sm:$0xff] %v598
  %663 = vst [vmem:[%s2 + $0x38] sm:$0xf] %v599
  %664 = vst [vmem:[%s2 + $0x3c] sm:$0xff] %v600
  %665 = vst [vmem:[%s2 + $0x44] sm:$0xf] %v601
  %666 = vst [vmem:[%s2 + $0x48] sm:$0xff] %v602
  %667 = vst [vmem:[%s2 + $0x50] sm:$0xf] %v603
  %668 = vst [vmem:[%s2 + $0x54] sm:$0xff] %v604
  %669 = vst [vmem:[%s2 + $0x5c] sm:$0xf] %v605
  %670 = vst [vmem:[%s2 + $0x60] sm:$0xff] %v606
  %671 = vst [vmem:[%s2 + $0x68] sm:$0xf] %v607
  %672 = vst [vmem:[%s2 + $0x6c] sm:$0xff] %v608
  %673 = vst [vmem:[%s2 + $0x74] sm:$0xf] %v609
  %674 = vst [vmem:[%s2 + $0x78] sm:$0xff] %v610
  %675 = vst [vmem:[%s2 + $0x80] sm:$0xf] %v611
  %676 = vst [vmem:[%s2 + $0x84] sm:$0xff] %v612
  %677 = vst [vmem:[%s2 + $0x8c] sm:$0xf] %v613
  %678 = vst [vmem:[%s2 + $0x90] sm:$0xff] %v614
  %679 = vst [vmem:[%s2 + $0x98] sm:$0xf] %v615
  %680 = vst [vmem:[%s2 + $0x9c] sm:$0xff] %v616
  %681 = vst [vmem:[%s2 + $0xa4] sm:$0xf] %v617
  %682 = vst [vmem:[%s2 + $0xa8] sm:$0xff] %v618
  %683 = vst [vmem:[%s2 + $0xb0] sm:$0xf] %v619
  %684 = vst [vmem:[%s2 + $0xb4] sm:$0xff] %v620
  %685 = vst [vmem:[%s2 + $0xbc] sm:$0xf] %v621
  // Predicated region
  $region10: #{encoder_apply.1} parent=0 // pred_check
    _
  $region11: #{encoder_apply.1} parent=0 // pred_check_branch
    %687 = sbr.rel (0) target = $region13
  $region12: #{encoder_apply.1} parent=0 // pred_region
    _
  $region13: #{encoder_apply.1} parent=0 // pred_fallthru
    _
  // Predicated region
  $region14: #{encoder_apply.1} parent=0 // pred_check
    _
  $region15: #{encoder_apply.1} parent=0 // pred_check_branch
    %689 = sbr.rel (0) target = $region17
  $region16: #{encoder_apply.1} parent=0 // pred_region
    _
  $region17: #{encoder_apply.1} parent=0 // pred_fallthru
    _

</llo_original>
